<compile_context>
chip_gen: v7x
topology: tpu7x:2x2x1
jax: 0.10.0
libtpu: 0.0.40
codegen_flags: <defaults>
</compile_context>

<pallas_src>
import jax
import jax.numpy as jnp
from jax import lax
from jax.experimental import pallas as pl
from jax.experimental.pallas import tpu as pltpu


def _round_up(v, m):
    return ((v + m - 1) // m) * m


def sage_kernel(ei_ref, x_ref, w_ref, b_ref, o_ref, h_ref, acc_ref, deg_ref):
    """One (node-tile i, edge-tile e) grid step of SAGEConv (mean aggregation)."""
    i = pl.program_id(0)
    e = pl.program_id(1)
    n_edge_tiles = pl.num_programs(1)

    N = x_ref.shape[0]           # padded node count (x resident in VMEM)
    TN, OP = o_ref.shape         # node tile, lane-padded out_dim (multiple of 128)
    TE = ei_ref.shape[1]         # edge tile

    row0 = pl.multiple_of(i * TN, TN)

    # ---- init (once per node tile): fused [lin_x | lin_self] for all nodes,
    # zero the message / degree accumulators. Recomputed per node tile so the
    # node axis stays megacore-safe ("parallel").
    @pl.when(e == 0)
    def _():
        h_ref[...] = (
            jnp.dot(x_ref[...], w_ref[...], preferred_element_type=jnp.float32)
            + b_ref[...])
        acc_ref[...] = jnp.zeros_like(acc_ref)
        deg_ref[...] = jnp.zeros_like(deg_ref)

    ei = ei_ref[...]                                    # (2, TE) int32
    src = ei[0:1, :]                                    # (1, TE) source nodes
    dst = ei[1:2, :]                                    # (1, TE) target nodes

    # One-hot incidence tiles, bf16 (values exactly 0/1; sentinel ids match nothing).
    all_ids = lax.broadcasted_iota(jnp.int32, (N, TE), 0)
    src_oh = (src == all_ids).astype(jnp.bfloat16)      # (N, TE)
    tile_ids = lax.broadcasted_iota(jnp.int32, (TN, TE), 0) + row0
    dst_oh = (dst == tile_ids).astype(jnp.bfloat16)     # (TN, TE)

    # gathered[t, :] == lin_x(x)[src[t], :]  (exact one-hot row select, f32 accum)
    xt = h_ref[:, pl.ds(0, OP)]                         # (N, OP) f32
    gathered = jnp.einsum("ne,nf->ef", src_oh, xt,
                          preferred_element_type=jnp.float32)    # (TE, OP)

    # Scatter-sum into this target-node tile + in-degree update.
    acc_ref[...] += jnp.dot(dst_oh, gathered, preferred_element_type=jnp.float32)
    deg_ref[...] += jnp.sum(dst_oh.astype(jnp.float32), axis=1, keepdims=True)

    # ---- finalize: mean-normalize and add the self-loop term (lane-dense store).
    @pl.when(e == n_edge_tiles - 1)
    def _():
        inv = pl.reciprocal(jnp.maximum(deg_ref[...], 1.0), approx=False)
        self_term = h_ref[pl.ds(row0, TN), pl.ds(OP, OP)]
        o_ref[...] = acc_ref[...] * inv + self_term


def general_gnn_sage(x, edge_index, wx, bx, ws, bs, *, tile_n=16, tile_e=128):
    """GeneralGNN('sage').forward(x, edge_index, edge_attr=None) in Pallas."""
    N, in_dim = x.shape
    out_dim = wx.shape[1]
    OP = _round_up(out_dim, 128)                 # lane-dense padded feature width

    TN = _round_up(min(tile_n, _round_up(N, 8)), 8)
    N_pad = _round_up(N, TN)
    TE = tile_e
    E = edge_index.shape[1]
    E_pad = max(_round_up(E, TE), TE)

    # Pad nodes (zero rows) and edges (sentinel index N_pad: dropped by the one-hot).
    x_p = jnp.zeros((N_pad, in_dim), jnp.float32).at[:N, :].set(x.astype(jnp.float32))
    ei_p = jnp.full((2, E_pad), N_pad, dtype=jnp.int32).at[:, :E].set(
        edge_index.astype(jnp.int32))

    # Fused, lane-padded weights: cols [0,OP) -> lin_x, [OP,2*OP) -> lin_self_loops.
    w_cat = jnp.zeros((in_dim, 2 * OP), jnp.float32)
    w_cat = w_cat.at[:, :out_dim].set(wx).at[:, OP:OP + out_dim].set(ws)
    b_cat = jnp.zeros((1, 2 * OP), jnp.float32)
    b_cat = b_cat.at[:, :out_dim].set(jnp.reshape(bx, (1, -1)))
    b_cat = b_cat.at[:, OP:OP + out_dim].set(jnp.reshape(bs, (1, -1)))

    grid = (N_pad // TN, E_pad // TE)
    out = pl.pallas_call(
        sage_kernel,
        out_shape=jax.ShapeDtypeStruct((N_pad, OP), jnp.float32),
        grid_spec=pltpu.PrefetchScalarGridSpec(
            num_scalar_prefetch=0,
            grid=grid,
            in_specs=[
                pl.BlockSpec((2, TE), lambda i, e: (0, e)),           # edge tile
                pl.BlockSpec((N_pad, in_dim), lambda i, e: (0, 0)),   # x (resident)
                pl.BlockSpec((in_dim, 2 * OP), lambda i, e: (0, 0)),  # fused weights
                pl.BlockSpec((1, 2 * OP), lambda i, e: (0, 0)),       # fused bias
            ],
            out_specs=pl.BlockSpec((TN, OP), lambda i, e: (i, 0)),
            scratch_shapes=[
                pltpu.VMEM((N_pad, 2 * OP), jnp.float32),  # h = [lin_x(x) | lin_self(x)]
                pltpu.VMEM((TN, OP), jnp.float32),         # message-sum accumulator
                pltpu.VMEM((TN, 1), jnp.float32),          # in-degree accumulator
            ]),
        compiler_params=pltpu.CompilerParams(
            dimension_semantics=("parallel", "arbitrary"),
            vmem_limit_bytes=32 * 1024 * 1024),
    )(ei_p, x_p, w_cat, b_cat)
    return out[:N, :out_dim]


def reference_sage(x, edge_index, wx, bx, ws, bs):
    """Pure-JAX reference of SAGEConv forward (mean aggr, no edge_attr)."""
    N = x.shape[0]
    xt = x @ wx + jnp.reshape(bx, (1, -1))
    src, dst = edge_index[0], edge_index[1]
    summed = jax.ops.segment_sum(xt[src], dst, num_segments=N)
    cnt = jax.ops.segment_sum(jnp.ones((src.shape[0],), jnp.float32), dst,
                              num_segments=N)
    mean = summed / jnp.maximum(cnt, 1.0)[:, None]
    return mean + x @ ws + jnp.reshape(bs, (1, -1))


if __name__ == "__main__":
    key = jax.random.PRNGKey(0)
    k_x, k_e, k_wx, k_bx, k_ws, k_bs = jax.random.split(key, 6)

    N, E = 32, 300            # nodes, edges (E padded to 384 = 3 edge tiles)
    in_dim, out_dim = 32, 16

    x = jax.random.normal(k_x, (N, in_dim), dtype=jnp.float32)
    edge_index = jax.random.randint(k_e, (2, E), 0, N, dtype=jnp.int32)

    # Deterministic glorot-uniform-like parameter init (shapes from SAGEConv.__init__)
    def glorot(k, shape):
        lim = (6.0 / (shape[0] + shape[1])) ** 0.5
        return jax.random.uniform(k, shape, jnp.float32, -lim, lim)

    wx = glorot(k_wx, (in_dim, out_dim))                              # lin_x.weight^T
    bx = jax.random.normal(k_bx, (1, out_dim), jnp.float32) * 0.01    # lin_x.bias
    ws = glorot(k_ws, (in_dim, out_dim))                              # lin_self_loops.weight^T
    bs = jax.random.normal(k_bs, (1, out_dim), jnp.float32) * 0.01    # lin_self_loops.bias

    out = general_gnn_sage(x, edge_index, wx, bx, ws, bs, tile_n=16, tile_e=128)
    out = jax.block_until_ready(out)

    ref = reference_sage(x, edge_index, wx, bx, ws, bs)
    assert out.shape == (N, out_dim)
    err = jnp.max(jnp.abs(out - ref))
    assert jnp.allclose(out, ref, atol=1e-4, rtol=1e-4), f"max abs err = {err}"

    print("KERNEL_OK")
</pallas_src>

<mosaic_0001>
module attributes {stable_mosaic.version = 11 : i64} {
  func.func @sage_kernel(%arg0: i32, %arg1: i32, %arg2: memref<2x128xi32, #tpu.memory_space<vmem>>, %arg3: memref<32x32xf32, #tpu.memory_space<vmem>>, %arg4: memref<32x256xf32, #tpu.memory_space<vmem>>, %arg5: memref<1x256xf32, #tpu.memory_space<vmem>>, %arg6: memref<16x128xf32, #tpu.memory_space<vmem>>, %arg7: memref<32x256xf32, #tpu.memory_space<vmem>>, %arg8: memref<16x128xf32, #tpu.memory_space<vmem>>, %arg9: memref<16x1xf32, #tpu.memory_space<vmem>>) attributes {dimension_semantics = [#tpu.dimension_semantics<parallel>, #tpu.dimension_semantics<arbitrary>], iteration_bounds = array<i64: 2, 3>, scalar_prefetch = 0 : i64, scratch_operands = 3 : i64, tpu.core_type = #tpu.core_type<tc>, window_params = [{transform_indices = @transform_0, window_bounds = array<i64: 2, 128>}, {pipeline_mode = #tpu.pipeline_mode<synchronous>, transform_indices = @transform_1, window_bounds = array<i64: 32, 32>}, {pipeline_mode = #tpu.pipeline_mode<synchronous>, transform_indices = @transform_2, window_bounds = array<i64: 32, 256>}, {pipeline_mode = #tpu.pipeline_mode<synchronous>, transform_indices = @transform_3, window_bounds = array<i64: 1, 256>}, {transform_indices = @transform_4, window_bounds = array<i64: 16, 128>}]} {
    %c16_i32 = arith.constant 16 : i32
    %0 = arith.muli %arg0, %c16_i32 : i32
    %1 = tpu.assume_multiple %0, 16 : i32
    %c0_i32 = arith.constant 0 : i32
    %2 = arith.cmpi eq, %arg1, %c0_i32 : i32
    %3 = arith.extui %2 : i1 to i32
    %c0_i32_0 = arith.constant 0 : i32
    %4 = arith.cmpi ne, %3, %c0_i32_0 : i32
    scf.if %4 {
      %c0_15 = arith.constant 0 : index
      %c0_16 = arith.constant 0 : index
      %37 = vector.load %arg3[%c0_15, %c0_16] : memref<32x32xf32, #tpu.memory_space<vmem>>, vector<32x32xf32>
      %c0_17 = arith.constant 0 : index
      %c0_18 = arith.constant 0 : index
      %38 = vector.load %arg4[%c0_17, %c0_18] : memref<32x256xf32, #tpu.memory_space<vmem>>, vector<32x256xf32>
      %cst_19 = arith.constant dense<0.000000e+00> : vector<32x256xf32>
      %39 = tpu.matmul %37, %38, %cst_19 {dimension_numbers = #tpu.dot_dimension_numbers<[1], [0], [0], [1], [0, 0, 1, 1], [], []>} : vector<32x32xf32>, vector<32x256xf32>, vector<32x256xf32> -> vector<32x256xf32>
      %c0_20 = arith.constant 0 : index
      %c0_21 = arith.constant 0 : index
      %40 = vector.load %arg5[%c0_20, %c0_21] : memref<1x256xf32, #tpu.memory_space<vmem>>, vector<1x256xf32>
      %41 = vector.broadcast %40 : vector<1x256xf32> to vector<32x256xf32>
      %42 = arith.addf %39, %41 : vector<32x256xf32>
      %c0_22 = arith.constant 0 : index
      %c0_23 = arith.constant 0 : index
      %43 = vector.load %arg7[%c0_22, %c0_23] : memref<32x256xf32, #tpu.memory_space<vmem>>, vector<32x256xf32>
      tpu.vector_store %arg7[%c0_22, %c0_23], %42 {strides = array<i32>} : memref<32x256xf32, #tpu.memory_space<vmem>>, vector<32x256xf32>,
      %cst_24 = arith.constant 0.000000e+00 : f32
      %44 = vector.broadcast %cst_24 : f32 to vector<16x128xf32>
      %c0_25 = arith.constant 0 : index
      %c0_26 = arith.constant 0 : index
      %45 = vector.load %arg8[%c0_25, %c0_26] : memref<16x128xf32, #tpu.memory_space<vmem>>, vector<16x128xf32>
      tpu.vector_store %arg8[%c0_25, %c0_26], %44 {strides = array<i32>} : memref<16x128xf32, #tpu.memory_space<vmem>>, vector<16x128xf32>,
      %cst_27 = arith.constant 0.000000e+00 : f32
      %46 = vector.broadcast %cst_27 : f32 to vector<16x1xf32>
      %c0_28 = arith.constant 0 : index
      %c0_29 = arith.constant 0 : index
      %47 = vector.load %arg9[%c0_28, %c0_29] : memref<16x1xf32, #tpu.memory_space<vmem>>, vector<16x1xf32>
      tpu.vector_store %arg9[%c0_28, %c0_29], %46 {strides = array<i32>} : memref<16x1xf32, #tpu.memory_space<vmem>>, vector<16x1xf32>,
    } else {
    }
    %c0 = arith.constant 0 : index
    %c0_1 = arith.constant 0 : index
    %5 = vector.load %arg2[%c0, %c0_1] : memref<2x128xi32, #tpu.memory_space<vmem>>, vector<2x128xi32>
    %6 = vector.extract_strided_slice %5 {offsets = [0, 0], sizes = [1, 128], strides = [1, 1]} : vector<2x128xi32> to vector<1x128xi32>
    %7 = vector.extract_strided_slice %5 {offsets = [1, 0], sizes = [1, 128], strides = [1, 1]} : vector<2x128xi32> to vector<1x128xi32>
    %8 = tpu.iota {dimensions = array<i32: 0>} : vector<32x128xi32>
    %9 = vector.broadcast %6 : vector<1x128xi32> to vector<32x128xi32>
    %10 = arith.cmpi eq, %9, %8 : vector<32x128xi32>
    %11 = arith.extui %10 : vector<32x128xi1> to vector<32x128xi32>
    %12 = arith.sitofp %11 : vector<32x128xi32> to vector<32x128xf32>
    %13 = arith.truncf %12 : vector<32x128xf32> to vector<32x128xbf16>
    %14 = tpu.iota {dimensions = array<i32: 0>} : vector<16x128xi32>
    %15 = vector.broadcast %1 : i32 to vector<16x128xi32>
    %16 = arith.addi %14, %15 : vector<16x128xi32>
    %17 = vector.broadcast %7 : vector<1x128xi32> to vector<16x128xi32>
    %18 = arith.cmpi eq, %17, %16 : vector<16x128xi32>
    %19 = arith.extui %18 : vector<16x128xi1> to vector<16x128xi32>
    %20 = arith.sitofp %19 : vector<16x128xi32> to vector<16x128xf32>
    %21 = arith.truncf %20 : vector<16x128xf32> to vector<16x128xbf16>
    %c0_2 = arith.constant 0 : index
    %c0_3 = arith.constant 0 : index
    %22 = vector.load %arg7[%c0_2, %c0_3] : memref<32x256xf32, #tpu.memory_space<vmem>>, vector<32x128xf32>
    "tpu.trace_start"() <{level = 10 : i32, message = "ne,nf->ef"}> : () -> ()
    %cst = arith.constant dense<0.000000e+00> : vector<128x128xf32>
    %23 = tpu.matmul %13, %22, %cst {dimension_numbers = #tpu.dot_dimension_numbers<[0], [0], [1], [1], [0, 1, 1, 1], [], []>} : vector<32x128xbf16>, vector<32x128xf32>, vector<128x128xf32> -> vector<128x128xf32>
    "tpu.trace_stop"() : () -> ()
    %c0_4 = arith.constant 0 : index
    %c0_5 = arith.constant 0 : index
    %24 = vector.load %arg8[%c0_4, %c0_5] : memref<16x128xf32, #tpu.memory_space<vmem>>, vector<16x128xf32>
    %cst_6 = arith.constant dense<0.000000e+00> : vector<16x128xf32>
    %25 = tpu.matmul %21, %23, %cst_6 {dimension_numbers = #tpu.dot_dimension_numbers<[1], [0], [0], [1], [0, 0, 1, 1], [], []>} : vector<16x128xbf16>, vector<128x128xf32>, vector<16x128xf32> -> vector<16x128xf32>
    %26 = arith.addf %24, %25 : vector<16x128xf32>
    %c0_7 = arith.constant 0 : index
    %c0_8 = arith.constant 0 : index
    %27 = vector.load %arg8[%c0_7, %c0_8] : memref<16x128xf32, #tpu.memory_space<vmem>>, vector<16x128xf32>
    tpu.vector_store %arg8[%c0_7, %c0_8], %26 {strides = array<i32>} : memref<16x128xf32, #tpu.memory_space<vmem>>, vector<16x128xf32>,
    %c0_9 = arith.constant 0 : index
    %c0_10 = arith.constant 0 : index
    %28 = vector.load %arg9[%c0_9, %c0_10] : memref<16x1xf32, #tpu.memory_space<vmem>>, vector<16x1xf32>
    %29 = arith.extf %21 : vector<16x128xbf16> to vector<16x128xf32>
    %cst_11 = arith.constant dense<0.000000e+00> : vector<16xf32>
    %30 = vector.multi_reduction <add>, %29, %cst_11 [1] : vector<16x128xf32> to vector<16xf32>
    %31 = vector.shape_cast %30 : vector<16xf32> to vector<16x1xf32>
    %32 = arith.addf %28, %31 : vector<16x1xf32>
    %c0_12 = arith.constant 0 : index
    %c0_13 = arith.constant 0 : index
    %33 = vector.load %arg9[%c0_12, %c0_13] : memref<16x1xf32, #tpu.memory_space<vmem>>, vector<16x1xf32>
    tpu.vector_store %arg9[%c0_12, %c0_13], %32 {strides = array<i32>} : memref<16x1xf32, #tpu.memory_space<vmem>>, vector<16x1xf32>,
    %c2_i32 = arith.constant 2 : i32
    %34 = arith.cmpi eq, %arg1, %c2_i32 : i32
    %35 = arith.extui %34 : i1 to i32
    %c0_i32_14 = arith.constant 0 : i32
    %36 = arith.cmpi ne, %35, %c0_i32_14 : i32
    scf.if %36 {
      %c0_15 = arith.constant 0 : index
      %c0_16 = arith.constant 0 : index
      %37 = vector.load %arg9[%c0_15, %c0_16] : memref<16x1xf32, #tpu.memory_space<vmem>>, vector<16x1xf32>
      %cst_17 = arith.constant 1.000000e+00 : f32
      %38 = vector.broadcast %cst_17 : f32 to vector<16x1xf32>
      %39 = arith.maximumf %37, %38 : vector<16x1xf32>
      %40 = tpu.reciprocal %39 : vector<16x1xf32> -> vector<16x1xf32>
      %41 = arith.index_cast %1 : i32 to index
      %c128 = arith.constant 128 : index
      %42 = vector.load %arg7[%41, %c128] : memref<32x256xf32, #tpu.memory_space<vmem>>, vector<16x128xf32>
      %c0_18 = arith.constant 0 : index
      %c0_19 = arith.constant 0 : index
      %43 = vector.load %arg8[%c0_18, %c0_19] : memref<16x128xf32, #tpu.memory_space<vmem>>, vector<16x128xf32>
      %44 = vector.broadcast %40 : vector<16x1xf32> to vector<16x128xf32>
      %45 = arith.mulf %43, %44 : vector<16x128xf32>
      %46 = arith.addf %45, %42 : vector<16x128xf32>
      %c0_20 = arith.constant 0 : index
      %c0_21 = arith.constant 0 : index
      %47 = vector.load %arg6[%c0_20, %c0_21] : memref<16x128xf32, #tpu.memory_space<vmem>>, vector<16x128xf32>
      tpu.vector_store %arg6[%c0_20, %c0_21], %46 {strides = array<i32>} : memref<16x128xf32, #tpu.memory_space<vmem>>, vector<16x128xf32>,
    } else {
    }
    return
  }
  func.func @transform_0(%arg0: i32, %arg1: i32) -> (i32, i32) {
    %c0_i32 = arith.constant 0 : i32
    %c0_i32_0 = arith.constant 0 : i32
    return %c0_i32, %arg1 : i32, i32
  }
  func.func @transform_1(%arg0: i32, %arg1: i32) -> (i32, i32) {
    %c0_i32 = arith.constant 0 : i32
    %c0_i32_0 = arith.constant 0 : i32
    %c0_i32_1 = arith.constant 0 : i32
    return %c0_i32, %c0_i32_0 : i32, i32
  }
  func.func @transform_2(%arg0: i32, %arg1: i32) -> (i32, i32) {
    %c0_i32 = arith.constant 0 : i32
    %c0_i32_0 = arith.constant 0 : i32
    %c0_i32_1 = arith.constant 0 : i32
    return %c0_i32, %c0_i32_0 : i32, i32
  }
  func.func @transform_3(%arg0: i32, %arg1: i32) -> (i32, i32) {
    %c0_i32 = arith.constant 0 : i32
    %c0_i32_0 = arith.constant 0 : i32
    %c0_i32_1 = arith.constant 0 : i32
    return %c0_i32, %c0_i32_0 : i32, i32
  }
  func.func @transform_4(%arg0: i32, %arg1: i32) -> (i32, i32) {
    %c0_i32 = arith.constant 0 : i32
    %c0_i32_0 = arith.constant 0 : i32
    return %arg0, %c0_i32 : i32, i32
  }
}

</mosaic_0001>

<llo_original>
// kernel: tpu_custom_call.1
$region0: #{tpu_custom_call.1}
  #allocation0 [shape = 'u32[]', space=smem, size = 0x4, offset = 0x4, fixed_abs, tag = 'smem constant byte address 0x4 - core index']
  #allocation1 [shape = 'u32[144,128]{1,0:T(1,128)}', space=vmem, size = 0x12000, scoped, tag = 'internal scratch']
  #allocation2 [shape = 'f32[32,256]{1,0:T(8,128)}', space=vmem, size = 0x8000, scoped, tag = 'scratch operand']
  #allocation3 [shape = 'f32[16,128]{1,0:T(8,128)}', space=vmem, size = 0x2000, scoped, tag = 'scratch operand']
  #allocation4 [shape = 'f32[16,1]{1,0:T(8,128)}', space=vmem, size = 0x2000, scoped, tag = 'scratch operand']
  %s0 = inlined_call_operand.hbm [shape: s32[2,384], index: 0, kind: input, shape index: {}]
  %s1 = inlined_call_operand.hbm [shape: f32[32,32], index: 1, kind: input, shape index: {}]
  %s2 = inlined_call_operand.hbm [shape: f32[32,256], index: 2, kind: input, shape index: {}]
  %s3 = inlined_call_operand.vmem [shape: f32[1,256], index: 3, kind: input, shape index: {}]
  %s4 = inlined_call_operand.hbm [shape: f32[32,128], index: 4, kind: output, shape index: {}]
  %s5 = sld [smem:[#allocation0]]
  $region69: #{tpu_custom_call.1} parent=0
    _
  %s7 = ssub.s32 1, %s5
  %s8 = scalar_select 0, %s7, %s5
  $region1: #{tpu_custom_call.1} parent=0
    #allocation5 [shape = 'u8[2048]{0}', space=vmem, size = 0x800, scoped, tag = 'input window, operand 0']
    #allocation6 [shape = 's32[2]{0}', space=sflag, size = 0x8, scoped, tag = 'scoped memory for tpu_custom_call.1']
    #allocation7 [shape = 's32[2]{0}', space=sflag, size = 0x8, scoped, tag = 'scoped memory for tpu_custom_call.1']
    #allocation8 [shape = 'u8[16384]{0}', space=vmem, size = 0x4000, scoped, tag = 'input window, operand 1, single buffered']
    #allocation9 [shape = 's32[1]{0}', space=sflag, size = 0x4, scoped, tag = 'scoped memory for tpu_custom_call.1']
    #allocation10 [shape = 'u8[32768]{0}', space=vmem, size = 0x8000, scoped, tag = 'input window, operand 2, single buffered']
    #allocation11 [shape = 'u8[16384]{0}', space=vmem, size = 0x4000, scoped, tag = 'output window, operand 0']
    %9 = vsyncpa [#allocation6], 0
    %s10 = scalar_lea.sflag [#allocation6], 1
    %11 = vsyncpa %s10, 0
    %12 = vsyncpa [#allocation9], 0
    %13 = vsyncpa [#allocation7], 0
    %s14 = scalar_lea.sflag [#allocation7], 1
    %15 = vsyncpa %s14, 0
    loop: start=0, step=1, limit=8
    $region2: #{tpu_custom_call.1} parent=1 // loop_pre_header
      _
    $region3: #{tpu_custom_call.1} parent=1 // loop_header
      %s17 = sphi 0, %s21
      %p18 = scmp.ge.s32.totalorder %s17, 8
      %s24 = sphi 0, %s36
      %s25 = sphi 0, %s32
      %s26 = sphi 0, %s24
      %s27 = sphi 0, %s25
      %s28 = sphi 0, %s26
      %s29 = sphi 0, %s27
      %s39 = sphi 0, %s41
      %s42 = sphi 0, %s39
      %s43 = sphi 0, %s42
      %s59 = sphi 0, %s43
      %s63 = sphi 0, %s63
      %s65 = sphi 0, %s63
      %s66 = sphi 0, %s65
      %s80 = sphi 0, %s66
      %s84 = sphi 0, %s84
      %s86 = sphi 0, %s84
      %s87 = sphi 0, %s86
      %s101 = sphi 0, %s87
      %s105 = sphi 0, %s105
      %s107 = sphi 0, %s105
      %s108 = sphi 0, %s107
      %s122 = sphi 0, %s108
      %s128 = sphi 0, %s130
      %s131 = sphi 0, %s128
      %s132 = sphi 0, %s131
      %s148 = sphi 0, %s132
    $region4: #{tpu_custom_call.1} parent=1 // loop_header_branch
      %20 = sbr.rel (%p18) target = $region8
    $region5: #{tpu_custom_call.1} parent=1 // loop_body
      %s22 = ssub.s32 %s17, 1
      %s23 = ssub.s32 %s17, 2
      %s30 = sadd.s32 1, %s25
      %p31 = scmp.ge.s32.totalorder %s30, 3
      %s32 = scalar_select %p31, 0, %s30
      %s33 = sadd.s32 1, %s24
      %s34 = scalar_select %p31, %s33, %s24
      %p35 = scmp.ge.s32.totalorder %s34, 2
      %s36 = scalar_select %p35, 0, %s34
      %s37 = ssub.s32 %s25, %s32
      %p38 = scmp.eq.s32.totalorder %s37, 0
      %s40 = sadd.s32 %s39, 1
      %s41 = scalar_select %p38, %s39, %s40
      %p44 = pneg %p38
      %p45 = scmp.eq.s32.totalorder %s17, 5
      %p46 = por %p44, %p45
      %p47 = scmp.ne.s32.totalorder %s39, %s42
      %p48 = scmp.eq.s32.totalorder %s17, 0
      %p49 = por %p47, %p48
      %p50 = scmp.ne.s32.totalorder %s39, %s42
      %p51 = scmp.eq.s32.totalorder %s22, 5
      %p52 = por %p50, %p51
      %p53 = scmp.ne.s32.totalorder %s42, %s43
      %p54 = scmp.eq.s32.totalorder %s22, 0
      %p55 = por %p53, %p54
      %p56 = scmp.ne.s32.totalorder %s42, %s43
      %p57 = scmp.eq.s32.totalorder %s23, 5
      %p58 = por %p56, %p57
      %p60 = scmp.ne.s32.totalorder %s43, %s59
      %p61 = scmp.eq.s32.totalorder %s23, 0
      %p62 = por %p60, %p61
      %s64 = sadd.s32 %s63, 1
      %p67 = scmp.eq.s32.totalorder %s17, 5
      %p68 = scmp.ne.s32.totalorder %s63, %s65
      %p69 = scmp.eq.s32.totalorder %s17, 0
      %p70 = por %p68, %p69
      %p71 = scmp.ne.s32.totalorder %s63, %s65
      %p72 = scmp.eq.s32.totalorder %s22, 5
      %p73 = por %p71, %p72
      %p74 = scmp.ne.s32.totalorder %s65, %s66
      %p75 = scmp.eq.s32.totalorder %s22, 0
      %p76 = por %p74, %p75
      %p77 = scmp.ne.s32.totalorder %s65, %s66
      %p78 = scmp.eq.s32.totalorder %s23, 5
      %p79 = por %p77, %p78
      %p81 = scmp.ne.s32.totalorder %s66, %s80
      %p82 = scmp.eq.s32.totalorder %s23, 0
      %p83 = por %p81, %p82
      %s85 = sadd.s32 %s84, 1
      %p88 = scmp.eq.s32.totalorder %s17, 5
      %p89 = scmp.ne.s32.totalorder %s84, %s86
      %p90 = scmp.eq.s32.totalorder %s17, 0
      %p91 = por %p89, %p90
      %p92 = scmp.ne.s32.totalorder %s84, %s86
      %p93 = scmp.eq.s32.totalorder %s22, 5
      %p94 = por %p92, %p93
      %p95 = scmp.ne.s32.totalorder %s86, %s87
      %p96 = scmp.eq.s32.totalorder %s22, 0
      %p97 = por %p95, %p96
      %p98 = scmp.ne.s32.totalorder %s86, %s87
      %p99 = scmp.eq.s32.totalorder %s23, 5
      %p100 = por %p98, %p99
      %p102 = scmp.ne.s32.totalorder %s87, %s101
      %p103 = scmp.eq.s32.totalorder %s23, 0
      %p104 = por %p102, %p103
      %s106 = sadd.s32 %s105, 1
      %p109 = scmp.eq.s32.totalorder %s17, 5
      %p110 = scmp.ne.s32.totalorder %s105, %s107
      %p111 = scmp.eq.s32.totalorder %s17, 0
      %p112 = por %p110, %p111
      %p113 = scmp.ne.s32.totalorder %s105, %s107
      %p114 = scmp.eq.s32.totalorder %s22, 5
      %p115 = por %p113, %p114
      %p116 = scmp.ne.s32.totalorder %s107, %s108
      %p117 = scmp.eq.s32.totalorder %s22, 0
      %p118 = por %p116, %p117
      %p119 = scmp.ne.s32.totalorder %s107, %s108
      %p120 = scmp.eq.s32.totalorder %s23, 5
      %p121 = por %p119, %p120
      %p123 = scmp.ne.s32.totalorder %s108, %s122
      %p124 = scmp.eq.s32.totalorder %s23, 0
      %p125 = por %p123, %p124
      %s126 = ssub.s32 %s24, %s36
      %p127 = scmp.eq.s32.totalorder %s126, 0
      %s129 = sadd.s32 %s128, 1
      %s130 = scalar_select %p127, %s128, %s129
      %p133 = pneg %p127
      %p134 = scmp.eq.s32.totalorder %s17, 5
      %p135 = por %p133, %p134
      %p136 = scmp.ne.s32.totalorder %s128, %s131
      %p137 = scmp.eq.s32.totalorder %s17, 0
      %p138 = por %p136, %p137
      %p139 = scmp.ne.s32.totalorder %s128, %s131
      %p140 = scmp.eq.s32.totalorder %s22, 5
      %p141 = por %p139, %p140
      %p142 = scmp.ne.s32.totalorder %s131, %s132
      %p143 = scmp.eq.s32.totalorder %s22, 0
      %p144 = por %p142, %p143
      %p145 = scmp.ne.s32.totalorder %s131, %s132
      %p146 = scmp.eq.s32.totalorder %s23, 5
      %p147 = por %p145, %p146
      %p149 = scmp.ne.s32.totalorder %s132, %s148
      %p150 = scmp.eq.s32.totalorder %s23, 0
      %p151 = por %p149, %p150
      %p152 = scmp.le.s32.totalorder 1, %s17
      %p153 = scmp.lt.s32.totalorder %s17, 7
      %p154 = pnand %p152, %p153
      %p155 = pneg %p154
      // Predicated region
      $region9: #{tpu_custom_call.1} parent=5 // pred_check
        _
      $region10: #{tpu_custom_call.1} parent=5 // pred_check_branch
        %157 = sbr.rel (%p154) target = $region12
      $region11: #{tpu_custom_call.1} parent=5 // pred_region
        %s158 = ssub.s32 %s17, 1
        // Predicated region
        $region13: #{tpu_custom_call.1} parent=11 // pred_check
          %p159 = pneg %p76
        $region14: #{tpu_custom_call.1} parent=11 // pred_check_branch
          %161 = sbr.rel (%p159) target = $region16
        $region15: #{tpu_custom_call.1} parent=11 // pred_region
          %s163 = ssub.s32 512, 512
          %164 = vsyncadd [#allocation9], %s163
          %s165 = sshll.u32 [#allocation8], 4
          %s166 = int_to_ptr.vmem [resolvable:$true] %s165
          %171 = dma.hbm_to_vmem [thread:$0]  %s1, 512, %s166, [#allocation9], 128, 128, 8
        $region16: #{tpu_custom_call.1} parent=11 // pred_fallthru
          _
        // Predicated region
        $region17: #{tpu_custom_call.1} parent=11 // pred_check
          %p172 = pneg %p97
        $region18: #{tpu_custom_call.1} parent=11 // pred_check_branch
          %174 = sbr.rel (%p172) target = $region20
        $region19: #{tpu_custom_call.1} parent=11 // pred_region
          %s176 = ssub.s32 1024, 1024
          %177 = vsyncadd [#allocation9], %s176
          %s178 = sshll.u32 [#allocation10], 4
          %s179 = int_to_ptr.vmem [resolvable:$true] %s178
          %184 = dma.hbm_to_vmem [thread:$0]  %s2, 1024, %s179, [#allocation9], 256, 256, 16
        $region20: #{tpu_custom_call.1} parent=11 // pred_fallthru
          _
        // Predicated region
        $region21: #{tpu_custom_call.1} parent=11 // pred_check
          %p185 = pneg %p118
        $region22: #{tpu_custom_call.1} parent=11 // pred_check_branch
          %187 = sbr.rel (%p185) target = $region24
        $region23: #{tpu_custom_call.1} parent=11 // pred_region
          _
        $region24: #{tpu_custom_call.1} parent=11 // pred_fallthru
          _
      $region12: #{tpu_custom_call.1} parent=5 // pred_fallthru
        _
      %p188 = scmp.lt.s32.totalorder %s17, 6
      // Predicated region
      $region25: #{tpu_custom_call.1} parent=5 // pred_check
        %p189 = pneg %p188
      $region26: #{tpu_custom_call.1} parent=5 // pred_check_branch
        %191 = sbr.rel (%p189) target = $region28
      $region27: #{tpu_custom_call.1} parent=5 // pred_region
        // Predicated region
        $region29: #{tpu_custom_call.1} parent=27 // pred_check
          %p192 = pneg %p49
        $region30: #{tpu_custom_call.1} parent=27 // pred_check_branch
          %194 = sbr.rel (%p192) target = $region32
        $region31: #{tpu_custom_call.1} parent=27 // pred_region
          %s195 = sand.u32 %s39, 1
          %s196 = scalar_lea.sflag [#allocation6], %s195
          %s197 = sand.u32 %s39, 1
          %s198 = smul.addr %s197, 2
          %s199 = scalar_lea.vmem [#allocation5], %s198
          %s201 = ssub.s32 32, 32
          %202 = vsyncadd %s196, %s201
          %s203 = smul.addr %s25, 32
          %s204 = scalar_lea.hbm %s0, %s203
          %s206 = sshll.u32 %s199, 4
          %s207 = int_to_ptr.vmem [resolvable:$true] %s206
          %209 = dma.hbm_to_vmem [thread:$0]  %s204, 32, %s207, %s196
        $region32: #{tpu_custom_call.1} parent=27 // pred_fallthru
          _
      $region28: #{tpu_custom_call.1} parent=5 // pred_fallthru
        _
      %p210 = scmp.le.s32.totalorder 1, %s17
      %p211 = scmp.lt.s32.totalorder %s17, 7
      %p212 = pnand %p210, %p211
      %p213 = pneg %p212
      // Predicated region
      $region33: #{tpu_custom_call.1} parent=5 // pred_check
        _
      $region34: #{tpu_custom_call.1} parent=5 // pred_check_branch
        %215 = sbr.rel (%p212) target = $region36
      $region35: #{tpu_custom_call.1} parent=5 // pred_region
        %s216 = ssub.s32 %s17, 1
        %s217 = sand.u32 %s42, 1
        %s218 = scalar_lea.sflag [#allocation6], %s217
        %s219 = sand.u32 %s42, 1
        %s220 = smul.addr %s219, 2
        %s221 = scalar_lea.vmem [#allocation5], %s220
        // Predicated region
        $region37: #{tpu_custom_call.1} parent=35 // pred_check
          %p222 = pneg %p55
        $region38: #{tpu_custom_call.1} parent=35 // pred_check_branch
          %224 = sbr.rel (%p222) target = $region40
        $region39: #{tpu_custom_call.1} parent=35 // pred_region
          %225 = dma.done %s218, 32
        $region40: #{tpu_custom_call.1} parent=35 // pred_fallthru
          _
        // Predicated region
        $region41: #{tpu_custom_call.1} parent=35 // pred_check
          %p226 = pneg %p76
        $region42: #{tpu_custom_call.1} parent=35 // pred_check_branch
          %228 = sbr.rel (%p226) target = $region44
        $region43: #{tpu_custom_call.1} parent=35 // pred_region
          %229 = dma.done [#allocation9], 512
        $region44: #{tpu_custom_call.1} parent=35 // pred_fallthru
          _
        // Predicated region
        $region45: #{tpu_custom_call.1} parent=35 // pred_check
          %p230 = pneg %p97
        $region46: #{tpu_custom_call.1} parent=35 // pred_check_branch
          %232 = sbr.rel (%p230) target = $region48
        $region47: #{tpu_custom_call.1} parent=35 // pred_region
          %233 = dma.done [#allocation9], 1024
        $region48: #{tpu_custom_call.1} parent=35 // pred_fallthru
          _
        %s234 = sand.u32 %s42, 1
        %s235 = scalar_lea.sflag [#allocation6], %s234
        %s236 = sand.u32 %s42, 1
        %s237 = smul.addr %s236, 2
        %s238 = scalar_lea.vmem [#allocation5], %s237
        %p239 = pneg %p55
        %p240 = pneg %p52
        %p241 = pneg %p76
        %p242 = pneg %p73
        %p243 = pneg %p97
        %p244 = pneg %p94
        %p245 = pneg %p118
        %p246 = pneg %p115
        %p247 = pneg %p144
        %p248 = pneg %p141
        %s249 = sand.u32 %s131, 1
        %s250 = scalar_lea.sflag [#allocation7], %s249
        %s251 = sand.u32 %s131, 1
        %s252 = smul.addr %s251, 16
        %s253 = scalar_lea.vmem [#allocation11], %s252
        %s254 = smul.u32 2, %s26
        %s256 = smul.u32 %s26, 16
        %p257 = scmp.eq.s32.totalorder %s27, 0
        // Predicated region
        $region49: #{tpu_custom_call.1} parent=35 // pred_check
          %p258 = pneg %p257
        $region50: #{tpu_custom_call.1} parent=35 // pred_check_branch
          %260 = sbr.rel (%p258) target = $region52
        $region51: #{tpu_custom_call.1} parent=35 // pred_region
          %v261 = vld [vmem:[#allocation8] sm:$0xff]
          %v262 = vld [vmem:[#allocation8 + $0x8] sm:$0xff]
          %v263 = vld [vmem:[#allocation8 + $0x10] sm:$0xff]
          %v264 = vld [vmem:[#allocation8 + $0x18] sm:$0xff]
          %v265 = vld [vmem:[#allocation10] sm:$0xff]
          %v266 = vld [vmem:[#allocation10 + $0x8] sm:$0xff]
          %v267 = vld [vmem:[#allocation10 + $0x10] sm:$0xff]
          %v268 = vld [vmem:[#allocation10 + $0x18] sm:$0xff]
          %v269 = vld [vmem:[#allocation10 + $0x20] sm:$0xff]
          %v270 = vld [vmem:[#allocation10 + $0x28] sm:$0xff]
          %v271 = vld [vmem:[#allocation10 + $0x30] sm:$0xff]
          %v272 = vld [vmem:[#allocation10 + $0x38] sm:$0xff]
          %v273 = vld [vmem:[%s3] sm:$0x3]
          %v275 = vlaneseq
          %v276 = vshrl.u32 %v275, 7
          %v277 = vsub.s32 0, %v276
          %v278 = vrot.slane %v273, %v277
          %v279 = vlaneseq
          %v280 = vshrl.u32 %v279, 7
          %v281 = vsub.s32 1, %v280
          %v282 = vrot.slane %v273, %v281
          %vm285 = vcmask 261120
          %v287 = vsel %vm285, %v261, 0
          %v290 = vsel %vm285, %v262, 0
          %v293 = vsel %vm285, %v263, 0
          %v296 = vsel %vm285, %v264, 0
          %298 = vmatprep.subr.mxu0 %v266
          %299 = vmatpush1.msra.mxu0 %v265
          %300 = vmatprep.subr.mxu0 %v268
          %301 = vmatpush1.msra.mxu0 %v267
          %302 = vmatprep.subr.mxu0 %v270
          %303 = vmatpush1.msra.mxu0 %v269
          %304 = vmatprep.subr.mxu0 %v272
          %305 = vmatpush1.msra.mxu0 %v271
          %306 = vmatprep.subr.mxu0 0.0
          %307 = vmatpush1.msra.mxu0 0.0
          %308 = vmatprep.subr.mxu0 0.0
          %309 = vmatpush1.msra.mxu0 0.0
          %310 = vmatprep.subr.mxu0 0.0
          %311 = vmatpush1.msra.mxu0 0.0
          %312 = vmatprep.subr.mxu0 0.0
          %313 = vmatpush1.msra.mxu0 0.0
          %314 = vmatprep.subr.mxu0 0.0
          %315 = vmatpush1.msra.mxu0 0.0
          %316 = vmatprep.subr.mxu0 0.0
          %317 = vmatpush1.msra.mxu0 0.0
          %318 = vmatprep.subr.mxu0 0.0
          %319 = vmatpush1.msra.mxu0 0.0
          %320 = vmatprep.subr.mxu0 0.0
          %321 = vmatpush1.msra.mxu0 0.0
          %322 = vmatprep.subr.mxu0 0.0
          %323 = vmatpush1.msra.mxu0 0.0
          %324 = vmatprep.subr.mxu0 0.0
          %325 = vmatpush1.msra.mxu0 0.0
          %326 = vmatprep.subr.mxu0 0.0
          %327 = vmatpush1.msra.mxu0 0.0
          %328 = vmatprep.subr.mxu0 0.0
          %329 = vmatpush1.msra.mxu0 0.0
          %330 = vmatprep.subr.mxu0 0.0
          %331 = vmatpush1.msra.mxu0 0.0
          %332 = vmatprep.subr.mxu0 0.0
          %333 = vmatpush1.msra.mxu0 0.0
          %334 = vmatprep.subr.mxu0 0.0
          %335 = vmatpush1.msra.mxu0 0.0
          %336 = vmatprep.subr.mxu0 0.0
          %337 = vmatpush1.msra.mxu0 0.0
          %338 = vmatprep.subr.mxu0 0.0
          %339 = vmatpush1.msra.mxu0 0.0
          %340 = vmatprep.subr.mxu0 0.0
          %341 = vmatpush1.msra.mxu0 0.0
          %342 = vmatprep.subr.mxu0 0.0
          %343 = vmatpush1.msra.mxu0 0.0
          %344 = vmatprep.subr.mxu0 0.0
          %345 = vmatpush1.msra.mxu0 0.0
          %346 = vmatprep.subr.mxu0 0.0
          %347 = vmatpush1.msra.mxu0 0.0
          %348 = vmatprep.subr.mxu0 0.0
          %349 = vmatpush1.msra.mxu0 0.0
          %350 = vmatprep.subr.mxu0 0.0
          %351 = vmatpush1.msra.mxu0 0.0
          %352 = vmatprep.subr.mxu0 0.0
          %353 = vmatpush1.msra.mxu0 0.0
          %354 = vmatprep.subr.mxu0 0.0
          %355 = vmatpush1.msra.mxu0 0.0
          %356 = vmatprep.subr.mxu0 0.0
          %357 = vmatpush1.msra.mxu0 0.0
          %358 = vmatprep.subr.mxu0 0.0
          %359 = vmatpush1.msra.mxu0 0.0
          %360 = vmatprep.subr.mxu0 0.0
          %361 = vmatpush1.msra.mxu0 0.0
          %362 = vmatprep.mubr.f32.mxu0 0.0
          %363 = vmatmul.mubr.f32.gmra.mrb[0].mxu0 %v287
          %v364 = vpop.f32.mrb[0].mxu0
          %v365 = vadd.f32 %v278, %v364
          %v366 = vpop.f32.mrb[0].mxu0
          %v367 = vadd.f32 %v282, %v366
          %368 = vmatprep.mubr.f32.mxu0 0.0
          %369 = vmatmul.mubr.f32.gmra.mrb[0].mxu0 %v290
          %v370 = vpop.f32.mrb[0].mxu0
          %v371 = vadd.f32 %v278, %v370
          %v372 = vpop.f32.mrb[0].mxu0
          %v373 = vadd.f32 %v282, %v372
          %374 = vmatprep.mubr.f32.mxu0 0.0
          %375 = vmatmul.mubr.f32.gmra.mrb[0].mxu0 %v293
          %v376 = vpop.f32.mrb[0].mxu0
          %v377 = vadd.f32 %v278, %v376
          %v378 = vpop.f32.mrb[0].mxu0
          %v379 = vadd.f32 %v282, %v378
          %380 = vmatprep.mubr.f32.mxu0 0.0
          %381 = vmatmul.mubr.f32.gmra.mrb[0].mxu0 %v296
          %v382 = vpop.f32.mrb[0].mxu0
          %v383 = vadd.f32 %v278, %v382
          %v384 = vpop.f32.mrb[0].mxu0
          %v385 = vadd.f32 %v282, %v384
          %386 = vdwg.mxu0
          %387 = vst [vmem:[#allocation2] sm:$0xff] %v365
          %388 = vst [vmem:[#allocation2 + $0x8] sm:$0xff] %v367
          %389 = vst [vmem:[#allocation2 + $0x10] sm:$0xff] %v371
          %390 = vst [vmem:[#allocation2 + $0x18] sm:$0xff] %v373
          %391 = vst [vmem:[#allocation2 + $0x20] sm:$0xff] %v377
          %392 = vst [vmem:[#allocation2 + $0x28] sm:$0xff] %v379
          %393 = vst [vmem:[#allocation2 + $0x30] sm:$0xff] %v383
          %394 = vst [vmem:[#allocation2 + $0x38] sm:$0xff] %v385
          %395 = vst [vmem:[#allocation3] sm:$0xff] 0.0
          %396 = vst [vmem:[#allocation3 + $0x8] sm:$0xff] 0.0
          %vm397 = vcmask 7168
          %398 = vst.msk [vmem:[#allocation4] sm:$0xff] %vm397, 0.0
          %399 = vst.msk [vmem:[#allocation4 + $0x8] sm:$0xff] %vm397, 0.0
        $region52: #{tpu_custom_call.1} parent=35 // pred_fallthru
          _
        %v400 = vld [vmem:[%s221] sm:$0x3]
        %v401 = vlaneseq
        %v402 = vshrl.u32 %v401, 7
        %v403 = vadd.s32 %v402, 8
        %v404 = vadd.s32 %v402, 16
        %v405 = vadd.s32 %v402, 24
        %v406 = vlaneseq
        %v407 = vshrl.u32 %v406, 7
        %v408 = vsub.s32 0, %v407
        %v409 = vrot.slane %v400, %v408
        %vm410 = vcmp.eq.s32.totalorder %v409, %v402
        %vm411 = vcmp.eq.s32.totalorder %v409, %v403
        %vm412 = vcmp.eq.s32.totalorder %v409, %v404
        %vm413 = vcmp.eq.s32.totalorder %v409, %v405
        %v414 = vsel %vm410, 1, 0
        %v415 = vsel %vm411, 1, 0
        %v416 = vsel %vm412, 1, 0
        %v417 = vsel %vm413, 1, 0
        %v418 = vcvt.s32.f32 %v414
        %v419 = vcvt.s32.f32 %v415
        %v420 = vcvt.s32.f32 %v416
        %v421 = vcvt.s32.f32 %v417
        %v422 = vpack.c.bf16 %v419, %v418
        %v423 = vpack.c.bf16 %v421, %v420
        %v424 = vstv %s256
        %v425 = vadd.s32 %v402, %v424
        %v426 = vadd.s32 %v403, %v424
        %v427 = vlaneseq
        %v428 = vshrl.u32 %v427, 7
        %v429 = vsub.s32 1, %v428
        %v430 = vrot.slane %v400, %v429
        %vm431 = vcmp.eq.s32.totalorder %v430, %v425
        %vm432 = vcmp.eq.s32.totalorder %v430, %v426
        %v433 = vsel %vm431, 1, 0
        %v434 = vsel %vm432, 1, 0
        %v435 = vcvt.s32.f32 %v433
        %v436 = vcvt.s32.f32 %v434
        %v437 = vpack.c.bf16 %v436, %v435
        %v438 = vld [vmem:[#allocation2] sm:$0xff]
        %v439 = vld [vmem:[#allocation2 + $0x10] sm:$0xff]
        %v440 = vld [vmem:[#allocation2 + $0x20] sm:$0xff]
        %v441 = vld [vmem:[#allocation2 + $0x30] sm:$0xff]
        %442 = vxpose.xlu0.c.b16.start [1/8] %v422, 128
        %443 = vxpose.xlu0.c.b16.cont [2/8] %v423, 128
        %444 = vxpose.xlu0.c.b16.cont [3/8] 0, 128
        %445 = vxpose.xlu0.c.b16.cont [4/8] 0, 128
        %446 = vxpose.xlu0.c.b16.cont [5/8] 0, 128
        %447 = vxpose.xlu0.c.b16.cont [6/8] 0, 128
        %448 = vxpose.xlu0.c.b16.cont [7/8] 0, 128
        %449 = vxpose.xlu0.c.b16.end [8/8] 0, 128
        %v450 = vpop.trf.xlu0
        %v451 = vpop.trf.xlu0
        %v452 = vpop.trf.xlu0
        %v453 = vpop.trf.xlu0
        %v454 = vpop.trf.xlu0
        %v455 = vpop.trf.xlu0
        %v456 = vpop.trf.xlu0
        %v457 = vpop.trf.xlu0
        %vm458 = vcmask 261120
        %v460 = vsel %vm458, %v450, 0
        %v463 = vsel %vm458, %v451, 0
        %v466 = vsel %vm458, %v452, 0
        %v469 = vsel %vm458, %v453, 0
        %v472 = vsel %vm458, %v454, 0
        %v475 = vsel %vm458, %v455, 0
        %v478 = vsel %vm458, %v456, 0
        %v481 = vsel %vm458, %v457, 0
        %483 = vmatprep.subr.mxu0 0.0
        %484 = vmatpush1.msra.mxu0 %v438
        %485 = vmatprep.subr.mxu0 0.0
        %486 = vmatpush1.msra.mxu0 %v439
        %487 = vmatprep.subr.mxu0 0.0
        %488 = vmatpush1.msra.mxu0 %v440
        %489 = vmatprep.subr.mxu0 0.0
        %490 = vmatpush1.msra.mxu0 %v441
        %491 = vmatprep.subr.mxu0 0.0
        %492 = vmatpush1.msra.mxu0 0.0
        %493 = vmatprep.subr.mxu0 0.0
        %494 = vmatpush1.msra.mxu0 0.0
        %495 = vmatprep.subr.mxu0 0.0
        %496 = vmatpush1.msra.mxu0 0.0
        %497 = vmatprep.subr.mxu0 0.0
        %498 = vmatpush1.msra.mxu0 0.0
        %499 = vmatprep.subr.mxu0 0.0
        %500 = vmatpush1.msra.mxu0 0.0
        %501 = vmatprep.subr.mxu0 0.0
        %502 = vmatpush1.msra.mxu0 0.0
        %503 = vmatprep.subr.mxu0 0.0
        %504 = vmatpush1.msra.mxu0 0.0
        %505 = vmatprep.subr.mxu0 0.0
        %506 = vmatpush1.msra.mxu0 0.0
        %507 = vmatprep.subr.mxu0 0.0
        %508 = vmatpush1.msra.mxu0 0.0
        %509 = vmatprep.subr.mxu0 0.0
        %510 = vmatpush1.msra.mxu0 0.0
        %511 = vmatprep.subr.mxu0 0.0
        %512 = vmatpush1.msra.mxu0 0.0
        %513 = vmatprep.subr.mxu0 0.0
        %514 = vmatpush1.msra.mxu0 0.0
        %515 = vmatprep.subr.mxu0 0.0
        %516 = vmatpush1.msra.mxu0 0.0
        %517 = vmatprep.subr.mxu0 0.0
        %518 = vmatpush1.msra.mxu0 0.0
        %519 = vmatprep.subr.mxu0 0.0
        %520 = vmatpush1.msra.mxu0 0.0
        %521 = vmatprep.subr.mxu0 0.0
        %522 = vmatpush1.msra.mxu0 0.0
        %523 = vmatprep.subr.mxu0 0.0
        %524 = vmatpush1.msra.mxu0 0.0
        %525 = vmatprep.subr.mxu0 0.0
        %526 = vmatpush1.msra.mxu0 0.0
        %527 = vmatprep.subr.mxu0 0.0
        %528 = vmatpush1.msra.mxu0 0.0
        %529 = vmatprep.subr.mxu0 0.0
        %530 = vmatpush1.msra.mxu0 0.0
        %531 = vmatprep.subr.mxu0 0.0
        %532 = vmatpush1.msra.mxu0 0.0
        %533 = vmatprep.subr.mxu0 0.0
        %534 = vmatpush1.msra.mxu0 0.0
        %535 = vmatprep.subr.mxu0 0.0
        %536 = vmatpush1.msra.mxu0 0.0
        %537 = vmatprep.subr.mxu0 0.0
        %538 = vmatpush1.msra.mxu0 0.0
        %539 = vmatprep.subr.mxu0 0.0
        %540 = vmatpush1.msra.mxu0 0.0
        %541 = vmatprep.subr.mxu0 0.0
        %542 = vmatpush1.msra.mxu0 0.0
        %543 = vmatprep.subr.mxu0 0.0
        %544 = vmatpush1.msra.mxu0 0.0
        %545 = vmatprep.subr.mxu0 0.0
        %546 = vmatpush1.msra.mxu0 0.0
        %547 = vmatprep.mubr.bf16.mxu0 0
        %548 = vmatmul.mubr.bf16.gmra.mrb[0].mxu0 %v460
        %v549 = vpop.f32.mrb[0].mxu0
        %v550 = vadd.f32 0.0, %v549
        %v551 = vpop.f32.mrb[0].mxu0
        %v552 = vpop.f32.mrb[0].mxu0
        %v553 = vadd.f32 0.0, %v552
        %v554 = vpop.f32.mrb[0].mxu0
        %555 = vmatprep.mubr.bf16.mxu0 0
        %556 = vmatmul.mubr.bf16.gmra.mrb[0].mxu0 %v463
        %v557 = vpop.f32.mrb[0].mxu0
        %v558 = vadd.f32 0.0, %v557
        %v559 = vpop.f32.mrb[0].mxu0
        %v560 = vpop.f32.mrb[0].mxu0
        %v561 = vadd.f32 0.0, %v560
        %v562 = vpop.f32.mrb[0].mxu0
        %563 = vmatprep.mubr.bf16.mxu0 0
        %564 = vmatmul.mubr.bf16.gmra.mrb[0].mxu0 %v466
        %v565 = vpop.f32.mrb[0].mxu0
        %v566 = vadd.f32 0.0, %v565
        %v567 = vpop.f32.mrb[0].mxu0
        %v568 = vpop.f32.mrb[0].mxu0
        %v569 = vadd.f32 0.0, %v568
        %v570 = vpop.f32.mrb[0].mxu0
        %571 = vmatprep.mubr.bf16.mxu0 0
        %572 = vmatmul.mubr.bf16.gmra.mrb[0].mxu0 %v469
        %v573 = vpop.f32.mrb[0].mxu0
        %v574 = vadd.f32 0.0, %v573
        %v575 = vpop.f32.mrb[0].mxu0
        %v576 = vpop.f32.mrb[0].mxu0
        %v577 = vadd.f32 0.0, %v576
        %v578 = vpop.f32.mrb[0].mxu0
        %579 = vmatprep.mubr.bf16.mxu0 0
        %580 = vmatmul.mubr.bf16.gmra.mrb[0].mxu0 %v472
        %v581 = vpop.f32.mrb[0].mxu0
        %v582 = vadd.f32 0.0, %v581
        %v583 = vpop.f32.mrb[0].mxu0
        %v584 = vpop.f32.mrb[0].mxu0
        %v585 = vadd.f32 0.0, %v584
        %v586 = vpop.f32.mrb[0].mxu0
        %587 = vmatprep.mubr.bf16.mxu0 0
        %588 = vmatmul.mubr.bf16.gmra.mrb[0].mxu0 %v475
        %v589 = vpop.f32.mrb[0].mxu0
        %v590 = vadd.f32 0.0, %v589
        %v591 = vpop.f32.mrb[0].mxu0
        %v592 = vpop.f32.mrb[0].mxu0
        %v593 = vadd.f32 0.0, %v592
        %v594 = vpop.f32.mrb[0].mxu0
        %595 = vmatprep.mubr.bf16.mxu0 0
        %596 = vmatmul.mubr.bf16.gmra.mrb[0].mxu0 %v478
        %v597 = vpop.f32.mrb[0].mxu0
        %v598 = vadd.f32 0.0, %v597
        %v599 = vpop.f32.mrb[0].mxu0
        %v600 = vpop.f32.mrb[0].mxu0
        %v601 = vadd.f32 0.0, %v600
        %v602 = vpop.f32.mrb[0].mxu0
        %603 = vmatprep.mubr.bf16.mxu0 0
        %604 = vmatmul.mubr.bf16.gmra.mrb[0].mxu0 %v481
        %v605 = vpop.f32.mrb[0].mxu0
        %v606 = vadd.f32 0.0, %v605
        %v607 = vpop.f32.mrb[0].mxu0
        %v608 = vpop.f32.mrb[0].mxu0
        %v609 = vadd.f32 0.0, %v608
        %v610 = vpop.f32.mrb[0].mxu0
        %611 = vdwg.mxu0
        %v612 = vld [vmem:[#allocation3] sm:$0xff]
        %v613 = vld [vmem:[#allocation3 + $0x8] sm:$0xff]
        %614 = vmatprep.subr.mxu0 0.0
        %615 = vmatpush1.msra.mxu0 %v550
        %616 = vmatprep.subr.mxu0 0.0
        %617 = vmatpush1.msra.mxu0 %v553
        %618 = vmatprep.subr.mxu0 0.0
        %619 = vmatpush1.msra.mxu0 %v558
        %620 = vmatprep.subr.mxu0 0.0
        %621 = vmatpush1.msra.mxu0 %v561
        %622 = vmatprep.subr.mxu0 0.0
        %623 = vmatpush1.msra.mxu0 %v566
        %624 = vmatprep.subr.mxu0 0.0
        %625 = vmatpush1.msra.mxu0 %v569
        %626 = vmatprep.subr.mxu0 0.0
        %627 = vmatpush1.msra.mxu0 %v574
        %628 = vmatprep.subr.mxu0 0.0
        %629 = vmatpush1.msra.mxu0 %v577
        %630 = vmatprep.subr.mxu0 0.0
        %631 = vmatpush1.msra.mxu0 %v582
        %632 = vmatprep.subr.mxu0 0.0
        %633 = vmatpush1.msra.mxu0 %v585
        %634 = vmatprep.subr.mxu0 0.0
        %635 = vmatpush1.msra.mxu0 %v590
        %636 = vmatprep.subr.mxu0 0.0
        %637 = vmatpush1.msra.mxu0 %v593
        %638 = vmatprep.subr.mxu0 0.0
        %639 = vmatpush1.msra.mxu0 %v598
        %640 = vmatprep.subr.mxu0 0.0
        %641 = vmatpush1.msra.mxu0 %v601
        %642 = vmatprep.subr.mxu0 0.0
        %643 = vmatpush1.msra.mxu0 %v606
        %644 = vmatprep.subr.mxu0 0.0
        %645 = vmatpush1.msra.mxu0 %v609
        %646 = vmatprep.subr.mxu0 0.0
        %647 = vmatpush1.msra.mxu0 0.0
        %648 = vmatprep.subr.mxu0 0.0
        %649 = vmatpush1.msra.mxu0 0.0
        %650 = vmatprep.subr.mxu0 0.0
        %651 = vmatpush1.msra.mxu0 0.0
        %652 = vmatprep.subr.mxu0 0.0
        %653 = vmatpush1.msra.mxu0 0.0
        %654 = vmatprep.subr.mxu0 0.0
        %655 = vmatpush1.msra.mxu0 0.0
        %656 = vmatprep.subr.mxu0 0.0
        %657 = vmatpush1.msra.mxu0 0.0
        %658 = vmatprep.subr.mxu0 0.0
        %659 = vmatpush1.msra.mxu0 0.0
        %660 = vmatprep.subr.mxu0 0.0
        %661 = vmatpush1.msra.mxu0 0.0
        %662 = vmatprep.subr.mxu0 0.0
        %663 = vmatpush1.msra.mxu0 0.0
        %664 = vmatprep.subr.mxu0 0.0
        %665 = vmatpush1.msra.mxu0 0.0
        %666 = vmatprep.subr.mxu0 0.0
        %667 = vmatpush1.msra.mxu0 0.0
        %668 = vmatprep.subr.mxu0 0.0
        %669 = vmatpush1.msra.mxu0 0.0
        %670 = vmatprep.subr.mxu0 0.0
        %671 = vmatpush1.msra.mxu0 0.0
        %672 = vmatprep.subr.mxu0 0.0
        %673 = vmatpush1.msra.mxu0 0.0
        %674 = vmatprep.subr.mxu0 0.0
        %675 = vmatpush1.msra.mxu0 0.0
        %676 = vmatprep.subr.mxu0 0.0
        %677 = vmatpush1.msra.mxu0 0.0
        %678 = vmatprep.mubr.bf16.mxu0 0
        %679 = vmatmul.mubr.bf16.gmra.mrb[0].mxu0 %v437
        %v680 = vpop.f32.mrb[0].mxu0
        %v681 = vadd.f32 0.0, %v680
        %v682 = vpop.f32.mrb[0].mxu0
        %v683 = vpop.f32.mrb[0].mxu0
        %v684 = vadd.f32 0.0, %v683
        %v685 = vpop.f32.mrb[0].mxu0
        %686 = vdwg.mxu0
        %v687 = vadd.f32 %v612, %v681
        %v688 = vadd.f32 %v613, %v684
        %689 = vst [vmem:[#allocation3] sm:$0xff] %v687
        %690 = vst [vmem:[#allocation3 + $0x8] sm:$0xff] %v688
        %v691 = vld [vmem:[#allocation4] sm:$0xff]
        %v692 = vld [vmem:[#allocation4 + $0x8] sm:$0xff]
        %v693 = vunpack.c.l.bf16 %v437
        %v694 = vunpack.c.h.bf16 %v437
        %695 = vadd.xlane.f32.xlu0 %v693
        %v696 = vpop.xlane.xlu0 %695
        %697 = vadd.xlane.f32.xlu0 %v694
        %v698 = vpop.xlane.xlu0 %697
        %v699 = vadd.f32 %v691, %v696
        %v700 = vadd.f32 %v692, %v698
        %vm701 = vcmask 7168
        %702 = vst.msk [vmem:[#allocation4] sm:$0xff] %vm701, %v699
        %703 = vst.msk [vmem:[#allocation4 + $0x8] sm:$0xff] %vm701, %v700
        %p704 = scmp.eq.s32.totalorder %s27, 2
        // Predicated region
        $region53: #{tpu_custom_call.1} parent=35 // pred_check
          %p705 = pneg %p704
        $region54: #{tpu_custom_call.1} parent=35 // pred_check_branch
          %707 = sbr.rel (%p705) target = $region56
        $region55: #{tpu_custom_call.1} parent=35 // pred_region
          %v708 = vld [vmem:[#allocation4] sm:$0xff]
          %v709 = vld [vmem:[#allocation4 + $0x8] sm:$0xff]
          %v710 = vmax.f32 %v708, 1.0
          %v711 = vmax.f32 %v709, 1.0
          %v712 = vrcp.pop %v710
          %v713 = vrcp.pop %v711
          %s714 = sshra.s32 %s256, 3
          %s715 = sand.u32 %s256, 7
          %s716 = smul.u32 %s714, 2
          %s717 = smul.addr %s716, 8
          %s718 = scalar_lea.vmem [#allocation2], %s717
          %v719 = vld [vmem:[%s718 + $0x8] sm:$0xff]
          %v720 = vld [vmem:[%s718 + $0x18] sm:$0xff]
          %v721 = vld [vmem:[#allocation3] sm:$0xff]
          %v722 = vld [vmem:[#allocation3 + $0x8] sm:$0xff]
          %724 = vset.pattern.permute.xlu0 0
          %725 = vperm.xlu0 %724, %v712
          %v726 = vpop.permute.xlu0 %725
          %729 = vset.pattern.permute.xlu0 0
          %730 = vperm.xlu0 %729, %v713
          %v731 = vpop.permute.xlu0 %730
          %v733 = vmul.f32 %v721, %v726
          %v734 = vmul.f32 %v722, %v731
          %v735 = vadd.f32 %v733, %v719
          %v736 = vadd.f32 %v734, %v720
          %737 = vst [vmem:[%s253] sm:$0xff] %v735
          %738 = vst [vmem:[%s253 + $0x8] sm:$0xff] %v736
        $region56: #{tpu_custom_call.1} parent=35 // pred_fallthru
          _
        %s739 = sand.u32 %s131, 1
        %s740 = scalar_lea.sflag [#allocation7], %s739
        %s741 = sand.u32 %s131, 1
        %s742 = smul.addr %s741, 16
        %s743 = scalar_lea.vmem [#allocation11], %s742
        // Predicated region
        $region57: #{tpu_custom_call.1} parent=35 // pred_check
          %p744 = pneg %p141
        $region58: #{tpu_custom_call.1} parent=35 // pred_check_branch
          %746 = sbr.rel (%p744) target = $region60
        $region59: #{tpu_custom_call.1} parent=35 // pred_region
          %s747 = smul.u32 2, %s26
          %s749 = ssub.s32 256, 256
          %750 = vsyncadd %s740, %s749
          %s751 = smul.addr %s747, 128
          %s752 = scalar_lea.hbm %s4, %s751
          %s753 = sshll.u32 %s743, 4
          %s754 = int_to_ptr.vmem [resolvable:$true] %s753
          %759 = dma.vmem_to_hbm [thread:$0]  %s754, 256, %s752, %s740, 128, 128, 8
        $region60: #{tpu_custom_call.1} parent=35 // pred_fallthru
          _
      $region36: #{tpu_custom_call.1} parent=5 // pred_fallthru
        _
      %p760 = scmp.le.s32.totalorder 2, %s17
      // Predicated region
      $region61: #{tpu_custom_call.1} parent=5 // pred_check
        %p761 = pneg %p760
      $region62: #{tpu_custom_call.1} parent=5 // pred_check_branch
        %763 = sbr.rel (%p761) target = $region64
      $region63: #{tpu_custom_call.1} parent=5 // pred_region
        %s764 = ssub.s32 %s17, 2
        // Predicated region
        $region65: #{tpu_custom_call.1} parent=63 // pred_check
          %p765 = pneg %p147
        $region66: #{tpu_custom_call.1} parent=63 // pred_check_branch
          %767 = sbr.rel (%p765) target = $region68
        $region67: #{tpu_custom_call.1} parent=63 // pred_region
          %s768 = sand.u32 %s132, 1
          %s769 = scalar_lea.sflag [#allocation7], %s768
          %s770 = sand.u32 %s132, 1
          %s771 = smul.addr %s770, 16
          %s772 = scalar_lea.vmem [#allocation11], %s771
          %773 = dma.done %s769, 256
        $region68: #{tpu_custom_call.1} parent=63 // pred_fallthru
          _
      $region64: #{tpu_custom_call.1} parent=5 // pred_fallthru
        _
    $region6: #{tpu_custom_call.1} parent=1 // loop_footer
      %s21 = sadd.s32 1, %s17
    $region7: #{tpu_custom_call.1} parent=1 // loop_footer_branch
      %16 = sbr.rel target = $region3
    $region8: #{tpu_custom_call.1} parent=1 // loop_exit
      _
    %774 = vsyncpa [#allocation6], 1
    %s775 = scalar_lea.sflag [#allocation6], 1
    %776 = vsyncpa %s775, 1
    %777 = vsyncpa [#allocation9], 1
    %778 = vsyncpa [#allocation7], 1
    %s779 = scalar_lea.sflag [#allocation7], 1
    %780 = vsyncpa %s779, 1

</llo_original>
